<compile_context>
chip_gen: v7x
topology: tpu7x:2x2x1
jax: 0.10.0
libtpu: 0.0.40
codegen_flags: <defaults>
</compile_context>

<pallas_src>
import jax
import jax.numpy as jnp
from jax import lax
from jax.experimental import pallas as pl
from jax.experimental.pallas import tpu as pltpu


# ---------------------------------------------------------------------------
# Kernel 1: fused q/k/v projection (the three 1x1 convs as one matmul).
# ---------------------------------------------------------------------------
def _qkv_proj_kernel(x_ref, w_ref, b_ref, q_ref, k_ref, v_ref):
    # x_ref: (1, tr, C) f32    w_ref: (C, 2*Cq + C) bf16 (pre-transposed)
    # b_ref: (1, 2*Cq + C) f32
    x = x_ref[0].astype(jnp.bfloat16)                                   # (tr, C)
    qkv = jnp.dot(x, w_ref[...], preferred_element_type=jnp.float32)    # (tr, Dtot)
    qkv = qkv + b_ref[...]
    cq = q_ref.shape[-1]
    q_ref[0] = qkv[:, :cq].astype(q_ref.dtype)
    k_ref[0] = qkv[:, cq:2 * cq].astype(k_ref.dtype)
    v_ref[0] = qkv[:, 2 * cq:].astype(v_ref.dtype)


# ---------------------------------------------------------------------------
# Kernel 2: flash-style attention + fused gamma * out + x residual.
# ---------------------------------------------------------------------------
def _flash_attn_kernel(q_ref, k_ref, v_ref, x_ref, gamma_ref, o_ref,
                       m_sc, l_sc, acc_sc):
    kv = pl.program_id(2)

    @pl.when(kv == 0)
    def _init():
        m_sc[...] = jnp.full(m_sc.shape, -jnp.inf, dtype=m_sc.dtype)
        l_sc[...] = jnp.zeros(l_sc.shape, dtype=l_sc.dtype)
        acc_sc[...] = jnp.zeros(acc_sc.shape, dtype=acc_sc.dtype)

    q = q_ref[0]                       # (tq, Cq) f32
    k = k_ref[0]                       # (tk, Cq) f32
    v = v_ref[0]                       # (tk, C)  bf16

    # energy[i, j] = <q_i, k_j>; contract the (tiny, C/8) channel dim of both.
    s = lax.dot_general(q, k, (((1,), (1,)), ((), ())),
                        preferred_element_type=jnp.float32)             # (tq, tk)

    m_prev = m_sc[...]
    m_new = jnp.maximum(m_prev, jnp.max(s, axis=-1, keepdims=True))     # (tq, 1)
    alpha = jnp.exp(m_prev - m_new)
    p = jnp.exp(s - m_new)                                              # (tq, tk)
    l_sc[...] = alpha * l_sc[...] + jnp.sum(p, axis=-1, keepdims=True)
    acc_sc[...] = alpha * acc_sc[...] + jnp.dot(
        p.astype(v.dtype), v, preferred_element_type=jnp.float32)       # (tq, C)
    m_sc[...] = m_new

    @pl.when(kv == pl.num_programs(2) - 1)
    def _finalize():
        # Fold gamma into the per-row softmax normalizer: one (tq, 1) scale,
        # then a single fused multiply-add over the (tq, C) accumulator.
        scale = gamma_ref[0, 0] * pl.reciprocal(l_sc[...], approx=True)  # (tq, 1)
        out = acc_sc[...] * scale + x_ref[0].astype(jnp.float32)
        o_ref[0] = out.astype(o_ref.dtype)


# ---------------------------------------------------------------------------
# Wrapper.
# ---------------------------------------------------------------------------
def _pick_tile(n):
    for t in (512, 256, 128):
        if n % t == 0:
            return t
    return n


def self_attn(x, wq, bq, wk, bk, wv, bv, gamma,
              *, tile_q=None, tile_kv=None, tile_rows=None):
    """x: (B, C, W, H) float32 (NCHW, like the PyTorch module). Returns (B, C, W, H)."""
    B, C, W, H = x.shape
    N = W * H
    Cq = wq.shape[0]
    Dtot = 2 * Cq + C

    tq = tile_q or _pick_tile(N)
    tk = tile_kv or _pick_tile(N)
    tr = tile_rows or _pick_tile(N)
    assert N % tq == 0 and N % tk == 0 and N % tr == 0

    # Kernel layout: (B, N, C), channels on the lane axis.
    x_flat = jnp.transpose(x.reshape(B, C, N), (0, 2, 1))               # (B, N, C)

    # Fused projection weights: one (C, 2*Cq + C) matrix, pre-transposed, bf16.
    wcat_t = jnp.concatenate([wq, wk, wv], axis=0).T.astype(jnp.bfloat16)
    bcat = jnp.concatenate([bq, bk, bv]).reshape(1, Dtot).astype(jnp.float32)
    gamma2 = gamma.reshape(1, 1).astype(jnp.float32)

    # --- Projection: q, k, v in one matmul per row tile. ---
    q, k, v = pl.pallas_call(
        _qkv_proj_kernel,
        out_shape=(jax.ShapeDtypeStruct((B, N, Cq), jnp.float32),
                   jax.ShapeDtypeStruct((B, N, Cq), jnp.float32),
                   jax.ShapeDtypeStruct((B, N, C), jnp.bfloat16)),
        grid_spec=pltpu.PrefetchScalarGridSpec(
            num_scalar_prefetch=0,
            grid=(B, N // tr),
            in_specs=[
                pl.BlockSpec((1, tr, C), lambda b, r: (b, r, 0)),       # x
                pl.BlockSpec((C, Dtot), lambda b, r: (0, 0)),           # Wcat^T
                pl.BlockSpec((1, Dtot), lambda b, r: (0, 0)),           # bias
            ],
            out_specs=[
                pl.BlockSpec((1, tr, Cq), lambda b, r: (b, r, 0)),      # q
                pl.BlockSpec((1, tr, Cq), lambda b, r: (b, r, 0)),      # k
                pl.BlockSpec((1, tr, C), lambda b, r: (b, r, 0)),       # v
            ],
        ),
        compiler_params=pltpu.CompilerParams(
            dimension_semantics=("parallel", "parallel"),
            vmem_limit_bytes=32 * 1024 * 1024),
    )(x_flat, wcat_t, bcat)

    # --- Flash attention + residual. ---
    out_flat = pl.pallas_call(
        _flash_attn_kernel,
        out_shape=jax.ShapeDtypeStruct((B, N, C), x.dtype),
        grid_spec=pltpu.PrefetchScalarGridSpec(
            num_scalar_prefetch=0,
            grid=(B, N // tq, N // tk),
            in_specs=[
                pl.BlockSpec((1, tq, Cq), lambda b, qi, ki: (b, qi, 0)),  # q
                pl.BlockSpec((1, tk, Cq), lambda b, qi, ki: (b, ki, 0)),  # k
                pl.BlockSpec((1, tk, C), lambda b, qi, ki: (b, ki, 0)),   # v
                pl.BlockSpec((1, tq, C), lambda b, qi, ki: (b, qi, 0)),   # x residual
                pl.BlockSpec(memory_space=pltpu.MemorySpace.SMEM),        # gamma
            ],
            out_specs=pl.BlockSpec((1, tq, C), lambda b, qi, ki: (b, qi, 0)),
            scratch_shapes=[
                pltpu.VMEM((tq, 1), jnp.float32),    # running max  m
                pltpu.VMEM((tq, 1), jnp.float32),    # running sum  l
                pltpu.VMEM((tq, C), jnp.float32),    # accumulator
            ],
        ),
        compiler_params=pltpu.CompilerParams(
            dimension_semantics=("parallel", "parallel", "arbitrary"),
            vmem_limit_bytes=32 * 1024 * 1024),
    )(q, k, v, x_flat, gamma2)

    # Back to NCHW.
    return jnp.transpose(out_flat, (0, 2, 1)).reshape(B, C, W, H)


def self_attn_reference(x, wq, bq, wk, bk, wv, bv, gamma):
    """Pure-JAX f32 reference matching the PyTorch forward exactly."""
    B, C, W, H = x.shape
    N = W * H
    xf = x.reshape(B, C, N)
    q = jnp.einsum('bcn,oc->bon', xf, wq) + bq[None, :, None]           # (B, Cq, N)
    k = jnp.einsum('bcn,oc->bon', xf, wk) + bk[None, :, None]
    v = jnp.einsum('bcn,oc->bon', xf, wv) + bv[None, :, None]           # (B, C, N)
    energy = jnp.einsum('bci,bcj->bij', q, k)                           # (B, N, N)
    att = jax.nn.softmax(energy, axis=-1)
    out = jnp.einsum('bcj,bij->bci', v, att).reshape(B, C, W, H)
    return gamma.reshape(()) * out + x


if __name__ == "__main__":
    key = jax.random.PRNGKey(0)
    # in_dim=16 -> query/key channels = 16 // 8 = 2 ; N = 16*16 = 256 so the
    # flash kernel runs 2 query tiles x 2 kv tiles of 128 (online softmax is
    # actually exercised across kv steps).
    B, C, W, H = 2, 16, 16, 16
    Cq = C // 8

    k_x, k_wq, k_bq, k_wk, k_bk, k_wv, k_bv = jax.random.split(key, 7)
    x = jax.random.normal(k_x, (B, C, W, H), dtype=jnp.float32)

    wq = jax.random.normal(k_wq, (Cq, C), dtype=jnp.float32) * 0.1
    bq = jax.random.normal(k_bq, (Cq,), dtype=jnp.float32) * 0.1
    wk = jax.random.normal(k_wk, (Cq, C), dtype=jnp.float32) * 0.1
    bk = jax.random.normal(k_bk, (Cq,), dtype=jnp.float32) * 0.1
    wv = jax.random.normal(k_wv, (C, C), dtype=jnp.float32) * 0.1
    bv = jax.random.normal(k_bv, (C,), dtype=jnp.float32) * 0.1
    # The module initializes gamma = 0 (output == input); use a nonzero value
    # so the attention path actually contributes and is tested.
    gamma = jnp.array([0.5], dtype=jnp.float32)

    out = self_attn(x, wq, bq, wk, bk, wv, bv, gamma, tile_q=128, tile_kv=128)
    out = jax.block_until_ready(out)

    ref = self_attn_reference(x, wq, bq, wk, bk, wv, bv, gamma)
    assert out.shape == (B, C, W, H)
    max_err = float(jnp.max(jnp.abs(out - ref)))
    # bf16 matmul inputs + approx reciprocal -> looser tolerance than pure f32.
    assert jnp.allclose(out, ref, atol=2e-2, rtol=2e-2), \
        f"mismatch vs reference (max abs err {max_err})"

    print("KERNEL_OK")
</pallas_src>

<mosaic_0001>
module attributes {stable_mosaic.version = 11 : i64} {
  func.func @_qkv_proj_kernel(%arg0: i32, %arg1: i32, %arg2: memref<1x256x16xf32, #tpu.memory_space<vmem>>, %arg3: memref<16x20xbf16, #tpu.memory_space<vmem>>, %arg4: memref<1x20xf32, #tpu.memory_space<vmem>>, %arg5: memref<1x256x2xf32, #tpu.memory_space<vmem>>, %arg6: memref<1x256x2xf32, #tpu.memory_space<vmem>>, %arg7: memref<1x256x16xbf16, #tpu.memory_space<vmem>>) attributes {dimension_semantics = [#tpu.dimension_semantics<parallel>, #tpu.dimension_semantics<parallel>], iteration_bounds = array<i64: 2, 1>, scalar_prefetch = 0 : i64, scratch_operands = 0 : i64, tpu.core_type = #tpu.core_type<tc>, window_params = [{transform_indices = @transform_0, window_bounds = array<i64: 1, 256, 16>}, {pipeline_mode = #tpu.pipeline_mode<synchronous>, transform_indices = @transform_1, window_bounds = array<i64: 16, 20>}, {pipeline_mode = #tpu.pipeline_mode<synchronous>, transform_indices = @transform_2, window_bounds = array<i64: 1, 20>}, {transform_indices = @transform_3, window_bounds = array<i64: 1, 256, 2>}, {transform_indices = @transform_4, window_bounds = array<i64: 1, 256, 2>}, {transform_indices = @transform_5, window_bounds = array<i64: 1, 256, 16>}]} {
    %c0 = arith.constant 0 : index
    %c0_0 = arith.constant 0 : index
    %c0_1 = arith.constant 0 : index
    %0 = vector.load %arg2[%c0, %c0_0, %c0_1] : memref<1x256x16xf32, #tpu.memory_space<vmem>>, vector<1x256x16xf32>
    %1 = vector.shape_cast %0 : vector<1x256x16xf32> to vector<256x16xf32>
    %2 = arith.truncf %1 : vector<256x16xf32> to vector<256x16xbf16>
    %c0_2 = arith.constant 0 : index
    %c0_3 = arith.constant 0 : index
    %3 = vector.load %arg3[%c0_2, %c0_3] : memref<16x20xbf16, #tpu.memory_space<vmem>>, vector<16x20xbf16>
    %cst = arith.constant dense<0.000000e+00> : vector<256x20xf32>
    %4 = tpu.matmul %2, %3, %cst {dimension_numbers = #tpu.dot_dimension_numbers<[1], [0], [0], [1], [0, 0, 1, 1], [], []>} : vector<256x16xbf16>, vector<16x20xbf16>, vector<256x20xf32> -> vector<256x20xf32>
    %c0_4 = arith.constant 0 : index
    %c0_5 = arith.constant 0 : index
    %5 = vector.load %arg4[%c0_4, %c0_5] : memref<1x20xf32, #tpu.memory_space<vmem>>, vector<1x20xf32>
    %6 = vector.broadcast %5 : vector<1x20xf32> to vector<256x20xf32>
    %7 = arith.addf %4, %6 : vector<256x20xf32>
    %8 = vector.extract_strided_slice %7 {offsets = [0, 0], sizes = [256, 2], strides = [1, 1]} : vector<256x20xf32> to vector<256x2xf32>
    %c0_6 = arith.constant 0 : index
    %c0_7 = arith.constant 0 : index
    %c0_8 = arith.constant 0 : index
    %9 = vector.load %arg5[%c0_6, %c0_7, %c0_8] : memref<1x256x2xf32, #tpu.memory_space<vmem>>, vector<1x256x2xf32>
    %10 = vector.shape_cast %9 : vector<1x256x2xf32> to vector<256x2xf32>
    %11 = vector.shape_cast %8 : vector<256x2xf32> to vector<1x256x2xf32>
    tpu.vector_store %arg5[%c0_6, %c0_7, %c0_8], %11 {strides = array<i32>} : memref<1x256x2xf32, #tpu.memory_space<vmem>>, vector<1x256x2xf32>,
    %12 = vector.extract_strided_slice %7 {offsets = [0, 2], sizes = [256, 2], strides = [1, 1]} : vector<256x20xf32> to vector<256x2xf32>
    %c0_9 = arith.constant 0 : index
    %c0_10 = arith.constant 0 : index
    %c0_11 = arith.constant 0 : index
    %13 = vector.load %arg6[%c0_9, %c0_10, %c0_11] : memref<1x256x2xf32, #tpu.memory_space<vmem>>, vector<1x256x2xf32>
    %14 = vector.shape_cast %13 : vector<1x256x2xf32> to vector<256x2xf32>
    %15 = vector.shape_cast %12 : vector<256x2xf32> to vector<1x256x2xf32>
    tpu.vector_store %arg6[%c0_9, %c0_10, %c0_11], %15 {strides = array<i32>} : memref<1x256x2xf32, #tpu.memory_space<vmem>>, vector<1x256x2xf32>,
    %16 = vector.extract_strided_slice %7 {offsets = [0, 4], sizes = [256, 16], strides = [1, 1]} : vector<256x20xf32> to vector<256x16xf32>
    %17 = arith.truncf %16 : vector<256x16xf32> to vector<256x16xbf16>
    %c0_12 = arith.constant 0 : index
    %c0_13 = arith.constant 0 : index
    %c0_14 = arith.constant 0 : index
    %18 = vector.load %arg7[%c0_12, %c0_13, %c0_14] : memref<1x256x16xbf16, #tpu.memory_space<vmem>>, vector<1x256x16xbf16>
    %19 = vector.shape_cast %18 : vector<1x256x16xbf16> to vector<256x16xbf16>
    %20 = vector.shape_cast %17 : vector<256x16xbf16> to vector<1x256x16xbf16>
    tpu.vector_store %arg7[%c0_12, %c0_13, %c0_14], %20 {strides = array<i32>} : memref<1x256x16xbf16, #tpu.memory_space<vmem>>, vector<1x256x16xbf16>,
    return
  }
  func.func @transform_0(%arg0: i32, %arg1: i32) -> (i32, i32, i32) {
    %c0_i32 = arith.constant 0 : i32
    %c0_i32_0 = arith.constant 0 : i32
    return %arg0, %arg1, %c0_i32 : i32, i32, i32
  }
  func.func @transform_1(%arg0: i32, %arg1: i32) -> (i32, i32) {
    %c0_i32 = arith.constant 0 : i32
    %c0_i32_0 = arith.constant 0 : i32
    %c0_i32_1 = arith.constant 0 : i32
    return %c0_i32, %c0_i32_0 : i32, i32
  }
  func.func @transform_2(%arg0: i32, %arg1: i32) -> (i32, i32) {
    %c0_i32 = arith.constant 0 : i32
    %c0_i32_0 = arith.constant 0 : i32
    %c0_i32_1 = arith.constant 0 : i32
    return %c0_i32, %c0_i32_0 : i32, i32
  }
  func.func @transform_3(%arg0: i32, %arg1: i32) -> (i32, i32, i32) {
    %c0_i32 = arith.constant 0 : i32
    %c0_i32_0 = arith.constant 0 : i32
    return %arg0, %arg1, %c0_i32 : i32, i32, i32
  }
  func.func @transform_4(%arg0: i32, %arg1: i32) -> (i32, i32, i32) {
    %c0_i32 = arith.constant 0 : i32
    %c0_i32_0 = arith.constant 0 : i32
    return %arg0, %arg1, %c0_i32 : i32, i32, i32
  }
  func.func @transform_5(%arg0: i32, %arg1: i32) -> (i32, i32, i32) {
    %c0_i32 = arith.constant 0 : i32
    %c0_i32_0 = arith.constant 0 : i32
    return %arg0, %arg1, %c0_i32 : i32, i32, i32
  }
}

</mosaic_0001>

<llo_original>
// kernel: tpu_custom_call.1
$region0: #{tpu_custom_call.1}
  #allocation0 [shape = 'u32[]', space=smem, size = 0x4, offset = 0x4, fixed_abs, tag = 'smem constant byte address 0x4 - core index']
  #allocation1 [shape = 'u32[144,128]{1,0:T(1,128)}', space=vmem, size = 0x12000, scoped, tag = 'internal scratch']
  %s0 = inlined_call_operand.vmem [shape: f32[2,256,16], index: 0, kind: input, shape index: {}]
  %s1 = inlined_call_operand.vmem [shape: bf16[16,20], index: 1, kind: input, shape index: {}]
  %s2 = inlined_call_operand.vmem [shape: f32[1,20], index: 2, kind: input, shape index: {}]
  %s3 = inlined_call_operand.vmem [shape: f32[2,256,2], index: 3, kind: output, shape index: {0}]
  %s4 = inlined_call_operand.vmem [shape: f32[2,256,2], index: 4, kind: output, shape index: {1}]
  %s5 = inlined_call_operand.vmem [shape: bf16[2,256,16], index: 5, kind: output, shape index: {2}]
  %6 = xla_tuple %s3, %s4, %s5
  %s7 = sld [smem:[#allocation0]]
  $region61: #{tpu_custom_call.1} parent=0
    _
  %s9 = ssub.s32 1, %s7
  %s10 = scalar_select 0, %s9, %s7
  loop: start=0, step=1, limit=4
  $region2: #{tpu_custom_call.1} parent=0 // loop_pre_header
    _
  $region3: #{tpu_custom_call.1} parent=0 // loop_header
    %s12 = sphi 0, %s16
    %p13 = scmp.ge.s32.totalorder %s12, 4
    %s19 = sphi 0, %s31
    %s20 = sphi 0, %s27
    %s21 = sphi 0, %s19
    %s22 = sphi 0, %s20
    %s23 = sphi 0, %s21
    %s24 = sphi 0, %s22
    %s36 = sphi 0, %s38
    %s39 = sphi 0, %s36
    %s40 = sphi 0, %s39
    %s56 = sphi 0, %s40
    %s60 = sphi 0, %s60
    %s62 = sphi 0, %s60
    %s63 = sphi 0, %s62
    %s77 = sphi 0, %s63
    %s81 = sphi 0, %s81
    %s83 = sphi 0, %s81
    %s84 = sphi 0, %s83
    %s98 = sphi 0, %s84
    %s106 = sphi 0, %s108
    %s109 = sphi 0, %s106
    %s110 = sphi 0, %s109
    %s126 = sphi 0, %s110
    %s134 = sphi 0, %s136
    %s137 = sphi 0, %s134
    %s138 = sphi 0, %s137
    %s154 = sphi 0, %s138
    %s162 = sphi 0, %s164
    %s165 = sphi 0, %s162
    %s166 = sphi 0, %s165
    %s182 = sphi 0, %s166
  $region4: #{tpu_custom_call.1} parent=0 // loop_header_branch
    %15 = sbr.rel (%p13) target = $region8
  $region5: #{tpu_custom_call.1} parent=0 // loop_body
    %s17 = ssub.s32 %s12, 1
    %s18 = ssub.s32 %s12, 2
    %s25 = sadd.s32 1, %s20
    %p26 = scmp.ge.s32.totalorder %s25, 1
    %s27 = scalar_select %p26, 0, %s25
    %s28 = sadd.s32 1, %s19
    %s29 = scalar_select %p26, %s28, %s19
    %p30 = scmp.ge.s32.totalorder %s29, 2
    %s31 = scalar_select %p30, 0, %s29
    %s32 = ssub.s32 %s19, %s31
    %s33 = ssub.s32 %s20, %s27
    %s34 = sor.u32 %s32, %s33
    %p35 = scmp.eq.s32.totalorder %s34, 0
    %s37 = sadd.s32 %s36, 1
    %s38 = scalar_select %p35, %s36, %s37
    %p41 = pneg %p35
    %p42 = scmp.eq.s32.totalorder %s12, 1
    %p43 = por %p41, %p42
    %p44 = scmp.ne.s32.totalorder %s36, %s39
    %p45 = scmp.eq.s32.totalorder %s12, 0
    %p46 = por %p44, %p45
    %p47 = scmp.ne.s32.totalorder %s36, %s39
    %p48 = scmp.eq.s32.totalorder %s17, 1
    %p49 = por %p47, %p48
    %p50 = scmp.ne.s32.totalorder %s39, %s40
    %p51 = scmp.eq.s32.totalorder %s17, 0
    %p52 = por %p50, %p51
    %p53 = scmp.ne.s32.totalorder %s39, %s40
    %p54 = scmp.eq.s32.totalorder %s18, 1
    %p55 = por %p53, %p54
    %p57 = scmp.ne.s32.totalorder %s40, %s56
    %p58 = scmp.eq.s32.totalorder %s18, 0
    %p59 = por %p57, %p58
    %s61 = sadd.s32 %s60, 1
    %p64 = scmp.eq.s32.totalorder %s12, 1
    %p65 = scmp.ne.s32.totalorder %s60, %s62
    %p66 = scmp.eq.s32.totalorder %s12, 0
    %p67 = por %p65, %p66
    %p68 = scmp.ne.s32.totalorder %s60, %s62
    %p69 = scmp.eq.s32.totalorder %s17, 1
    %p70 = por %p68, %p69
    %p71 = scmp.ne.s32.totalorder %s62, %s63
    %p72 = scmp.eq.s32.totalorder %s17, 0
    %p73 = por %p71, %p72
    %p74 = scmp.ne.s32.totalorder %s62, %s63
    %p75 = scmp.eq.s32.totalorder %s18, 1
    %p76 = por %p74, %p75
    %p78 = scmp.ne.s32.totalorder %s63, %s77
    %p79 = scmp.eq.s32.totalorder %s18, 0
    %p80 = por %p78, %p79
    %s82 = sadd.s32 %s81, 1
    %p85 = scmp.eq.s32.totalorder %s12, 1
    %p86 = scmp.ne.s32.totalorder %s81, %s83
    %p87 = scmp.eq.s32.totalorder %s12, 0
    %p88 = por %p86, %p87
    %p89 = scmp.ne.s32.totalorder %s81, %s83
    %p90 = scmp.eq.s32.totalorder %s17, 1
    %p91 = por %p89, %p90
    %p92 = scmp.ne.s32.totalorder %s83, %s84
    %p93 = scmp.eq.s32.totalorder %s17, 0
    %p94 = por %p92, %p93
    %p95 = scmp.ne.s32.totalorder %s83, %s84
    %p96 = scmp.eq.s32.totalorder %s18, 1
    %p97 = por %p95, %p96
    %p99 = scmp.ne.s32.totalorder %s84, %s98
    %p100 = scmp.eq.s32.totalorder %s18, 0
    %p101 = por %p99, %p100
    %s102 = ssub.s32 %s19, %s31
    %s103 = ssub.s32 %s20, %s27
    %s104 = sor.u32 %s102, %s103
    %p105 = scmp.eq.s32.totalorder %s104, 0
    %s107 = sadd.s32 %s106, 1
    %s108 = scalar_select %p105, %s106, %s107
    %p111 = pneg %p105
    %p112 = scmp.eq.s32.totalorder %s12, 1
    %p113 = por %p111, %p112
    %p114 = scmp.ne.s32.totalorder %s106, %s109
    %p115 = scmp.eq.s32.totalorder %s12, 0
    %p116 = por %p114, %p115
    %p117 = scmp.ne.s32.totalorder %s106, %s109
    %p118 = scmp.eq.s32.totalorder %s17, 1
    %p119 = por %p117, %p118
    %p120 = scmp.ne.s32.totalorder %s109, %s110
    %p121 = scmp.eq.s32.totalorder %s17, 0
    %p122 = por %p120, %p121
    %p123 = scmp.ne.s32.totalorder %s109, %s110
    %p124 = scmp.eq.s32.totalorder %s18, 1
    %p125 = por %p123, %p124
    %p127 = scmp.ne.s32.totalorder %s110, %s126
    %p128 = scmp.eq.s32.totalorder %s18, 0
    %p129 = por %p127, %p128
    %s130 = ssub.s32 %s19, %s31
    %s131 = ssub.s32 %s20, %s27
    %s132 = sor.u32 %s130, %s131
    %p133 = scmp.eq.s32.totalorder %s132, 0
    %s135 = sadd.s32 %s134, 1
    %s136 = scalar_select %p133, %s134, %s135
    %p139 = pneg %p133
    %p140 = scmp.eq.s32.totalorder %s12, 1
    %p141 = por %p139, %p140
    %p142 = scmp.ne.s32.totalorder %s134, %s137
    %p143 = scmp.eq.s32.totalorder %s12, 0
    %p144 = por %p142, %p143
    %p145 = scmp.ne.s32.totalorder %s134, %s137
    %p146 = scmp.eq.s32.totalorder %s17, 1
    %p147 = por %p145, %p146
    %p148 = scmp.ne.s32.totalorder %s137, %s138
    %p149 = scmp.eq.s32.totalorder %s17, 0
    %p150 = por %p148, %p149
    %p151 = scmp.ne.s32.totalorder %s137, %s138
    %p152 = scmp.eq.s32.totalorder %s18, 1
    %p153 = por %p151, %p152
    %p155 = scmp.ne.s32.totalorder %s138, %s154
    %p156 = scmp.eq.s32.totalorder %s18, 0
    %p157 = por %p155, %p156
    %s158 = ssub.s32 %s19, %s31
    %s159 = ssub.s32 %s20, %s27
    %s160 = sor.u32 %s158, %s159
    %p161 = scmp.eq.s32.totalorder %s160, 0
    %s163 = sadd.s32 %s162, 1
    %s164 = scalar_select %p161, %s162, %s163
    %p167 = pneg %p161
    %p168 = scmp.eq.s32.totalorder %s12, 1
    %p169 = por %p167, %p168
    %p170 = scmp.ne.s32.totalorder %s162, %s165
    %p171 = scmp.eq.s32.totalorder %s12, 0
    %p172 = por %p170, %p171
    %p173 = scmp.ne.s32.totalorder %s162, %s165
    %p174 = scmp.eq.s32.totalorder %s17, 1
    %p175 = por %p173, %p174
    %p176 = scmp.ne.s32.totalorder %s165, %s166
    %p177 = scmp.eq.s32.totalorder %s17, 0
    %p178 = por %p176, %p177
    %p179 = scmp.ne.s32.totalorder %s165, %s166
    %p180 = scmp.eq.s32.totalorder %s18, 1
    %p181 = por %p179, %p180
    %p183 = scmp.ne.s32.totalorder %s166, %s182
    %p184 = scmp.eq.s32.totalorder %s18, 0
    %p185 = por %p183, %p184
    %p186 = scmp.le.s32.totalorder 1, %s12
    %p187 = scmp.lt.s32.totalorder %s12, 3
    %p188 = pnand %p186, %p187
    %p189 = pneg %p188
    // Predicated region
    $region9: #{tpu_custom_call.1} parent=5 // pred_check
      _
    $region10: #{tpu_custom_call.1} parent=5 // pred_check_branch
      %191 = sbr.rel (%p188) target = $region12
    $region11: #{tpu_custom_call.1} parent=5 // pred_region
      %s192 = ssub.s32 %s12, 1
      // Predicated region
      $region13: #{tpu_custom_call.1} parent=11 // pred_check
        %p193 = pneg %p73
      $region14: #{tpu_custom_call.1} parent=11 // pred_check_branch
        %195 = sbr.rel (%p193) target = $region16
      $region15: #{tpu_custom_call.1} parent=11 // pred_region
        _
      $region16: #{tpu_custom_call.1} parent=11 // pred_fallthru
        _
      // Predicated region
      $region17: #{tpu_custom_call.1} parent=11 // pred_check
        %p196 = pneg %p94
      $region18: #{tpu_custom_call.1} parent=11 // pred_check_branch
        %198 = sbr.rel (%p196) target = $region20
      $region19: #{tpu_custom_call.1} parent=11 // pred_region
        _
      $region20: #{tpu_custom_call.1} parent=11 // pred_fallthru
        _
    $region12: #{tpu_custom_call.1} parent=5 // pred_fallthru
      _
    %p199 = scmp.lt.s32.totalorder %s12, 2
    // Predicated region
    $region21: #{tpu_custom_call.1} parent=5 // pred_check
      %p200 = pneg %p199
    $region22: #{tpu_custom_call.1} parent=5 // pred_check_branch
      %202 = sbr.rel (%p200) target = $region24
    $region23: #{tpu_custom_call.1} parent=5 // pred_region
      // Predicated region
      $region25: #{tpu_custom_call.1} parent=23 // pred_check
        %p203 = pneg %p46
      $region26: #{tpu_custom_call.1} parent=23 // pred_check_branch
        %205 = sbr.rel (%p203) target = $region28
      $region27: #{tpu_custom_call.1} parent=23 // pred_region
        %s206 = smul.u32 32, %s20
        %p207 = scmp.lt.s32.totalorder %s19, 1
        %s208 = scalar_select %p207, %s19, 1
        %p209 = scmp.lt.s32.totalorder %s206, 31
        %s210 = scalar_select %p209, %s206, 31
        %s211 = smul.addr %s208, 32
        %s212 = sadd.s32 %s210, %s211
        %s213 = smul.addr %s212, 8
        %s214 = scalar_lea.vmem %s0, %s213
        %s215 = smul.u32 32, %s20
      $region28: #{tpu_custom_call.1} parent=23 // pred_fallthru
        _
    $region24: #{tpu_custom_call.1} parent=5 // pred_fallthru
      _
    %p216 = scmp.le.s32.totalorder 1, %s12
    %p217 = scmp.lt.s32.totalorder %s12, 3
    %p218 = pnand %p216, %p217
    %p219 = pneg %p218
    // Predicated region
    $region29: #{tpu_custom_call.1} parent=5 // pred_check
      _
    $region30: #{tpu_custom_call.1} parent=5 // pred_check_branch
      %221 = sbr.rel (%p218) target = $region32
    $region31: #{tpu_custom_call.1} parent=5 // pred_region
      %s222 = ssub.s32 %s12, 1
      %s223 = smul.u32 32, %s22
      %p224 = scmp.lt.s32.totalorder %s21, 1
      %s225 = scalar_select %p224, %s21, 1
      %p226 = scmp.lt.s32.totalorder %s223, 31
      %s227 = scalar_select %p226, %s223, 31
      %s228 = smul.addr %s225, 32
      %s229 = sadd.s32 %s227, %s228
      %s230 = smul.addr %s229, 8
      %s231 = scalar_lea.vmem %s0, %s230
      %p232 = pneg %p52
      %p233 = pneg %p49
      %p234 = pneg %p73
      %p235 = pneg %p70
      %p236 = pneg %p94
      %p237 = pneg %p91
      %p238 = pneg %p122
      %p239 = pneg %p119
      %s240 = smul.u32 32, %s22
      %p241 = scmp.lt.s32.totalorder %s21, 1
      %s242 = scalar_select %p241, %s21, 1
      %p243 = scmp.lt.s32.totalorder %s240, 31
      %s244 = scalar_select %p243, %s240, 31
      %s245 = smul.addr %s242, 32
      %s246 = sadd.s32 %s244, %s245
      %s247 = smul.addr %s246, 8
      %s248 = scalar_lea.vmem %s3, %s247
      %p249 = pneg %p150
      %p250 = pneg %p147
      %s251 = smul.u32 32, %s22
      %p252 = scmp.lt.s32.totalorder %s21, 1
      %s253 = scalar_select %p252, %s21, 1
      %p254 = scmp.lt.s32.totalorder %s251, 31
      %s255 = scalar_select %p254, %s251, 31
      %s256 = smul.addr %s253, 32
      %s257 = sadd.s32 %s255, %s256
      %s258 = smul.addr %s257, 8
      %s259 = scalar_lea.vmem %s4, %s258
      %p260 = pneg %p178
      %p261 = pneg %p175
      %s262 = smul.u32 32, %s22
      %p263 = scmp.lt.s32.totalorder %s21, 1
      %s264 = scalar_select %p263, %s21, 1
      %p265 = scmp.lt.s32.totalorder %s262, 31
      %s266 = scalar_select %p265, %s262, 31
      %s267 = smul.addr %s264, 32
      %s268 = sadd.s32 %s266, %s267
      %s269 = smul.addr %s268, 4
      %s270 = scalar_lea.vmem %s5, %s269
      %s271 = smul.u32 32, %s22
      %p272 = scmp.lt.s32.totalorder %s21, 1
      %s273 = scalar_select %p272, %s21, 1
      %p274 = scmp.lt.s32.totalorder %s271, 31
      %s275 = scalar_select %p274, %s271, 31
      %s276 = smul.addr %s273, 32
      %s277 = sadd.s32 %s275, %s276
      %s278 = smul.addr %s277, 8
      %s279 = scalar_lea.vmem %s0, %s278
      %s280 = smul.u32 32, %s22
      %s281 = smul.u32 32, %s22
      %p282 = scmp.lt.s32.totalorder %s21, 1
      %s283 = scalar_select %p282, %s21, 1
      %p284 = scmp.lt.s32.totalorder %s281, 31
      %s285 = scalar_select %p284, %s281, 31
      %s286 = smul.addr %s283, 32
      %s287 = sadd.s32 %s285, %s286
      %s288 = smul.addr %s287, 8
      %s289 = scalar_lea.vmem %s3, %s288
      %s290 = smul.u32 32, %s22
      %s291 = smul.u32 32, %s22
      %p292 = scmp.lt.s32.totalorder %s21, 1
      %s293 = scalar_select %p292, %s21, 1
      %p294 = scmp.lt.s32.totalorder %s291, 31
      %s295 = scalar_select %p294, %s291, 31
      %s296 = smul.addr %s293, 32
      %s297 = sadd.s32 %s295, %s296
      %s298 = smul.addr %s297, 8
      %s299 = scalar_lea.vmem %s4, %s298
      %s300 = smul.u32 32, %s22
      %s301 = smul.u32 32, %s22
      %p302 = scmp.lt.s32.totalorder %s21, 1
      %s303 = scalar_select %p302, %s21, 1
      %p304 = scmp.lt.s32.totalorder %s301, 31
      %s305 = scalar_select %p304, %s301, 31
      %s306 = smul.addr %s303, 32
      %s307 = sadd.s32 %s305, %s306
      %s308 = smul.addr %s307, 4
      %s309 = scalar_lea.vmem %s5, %s308
      %s310 = smul.u32 32, %s22
      %v312 = vld [vmem:[%s279] sm:$0xff]
      %v313 = vld [vmem:[%s279 + $0x8] sm:$0xff]
      %v314 = vld [vmem:[%s279 + $0x10] sm:$0xff]
      %v315 = vld [vmem:[%s279 + $0x18] sm:$0xff]
      %v316 = vld [vmem:[%s279 + $0x20] sm:$0xff]
      %v317 = vld [vmem:[%s279 + $0x28] sm:$0xff]
      %v318 = vld [vmem:[%s279 + $0x30] sm:$0xff]
      %v319 = vld [vmem:[%s279 + $0x38] sm:$0xff]
      %v320 = vld [vmem:[%s279 + $0x40] sm:$0xff]
      %v321 = vld [vmem:[%s279 + $0x48] sm:$0xff]
      %v322 = vld [vmem:[%s279 + $0x50] sm:$0xff]
      %v323 = vld [vmem:[%s279 + $0x58] sm:$0xff]
      %v324 = vld [vmem:[%s279 + $0x60] sm:$0xff]
      %v325 = vld [vmem:[%s279 + $0x68] sm:$0xff]
      %v326 = vld [vmem:[%s279 + $0x70] sm:$0xff]
      %v327 = vld [vmem:[%s279 + $0x78] sm:$0xff]
      %v328 = vld [vmem:[%s279 + $0x80] sm:$0xff]
      %v329 = vld [vmem:[%s279 + $0x88] sm:$0xff]
      %v330 = vld [vmem:[%s279 + $0x90] sm:$0xff]
      %v331 = vld [vmem:[%s279 + $0x98] sm:$0xff]
      %v332 = vld [vmem:[%s279 + $0xa0] sm:$0xff]
      %v333 = vld [vmem:[%s279 + $0xa8] sm:$0xff]
      %v334 = vld [vmem:[%s279 + $0xb0] sm:$0xff]
      %v335 = vld [vmem:[%s279 + $0xb8] sm:$0xff]
      %v336 = vld [vmem:[%s279 + $0xc0] sm:$0xff]
      %v337 = vld [vmem:[%s279 + $0xc8] sm:$0xff]
      %v338 = vld [vmem:[%s279 + $0xd0] sm:$0xff]
      %v339 = vld [vmem:[%s279 + $0xd8] sm:$0xff]
      %v340 = vld [vmem:[%s279 + $0xe0] sm:$0xff]
      %v341 = vld [vmem:[%s279 + $0xe8] sm:$0xff]
      %v342 = vld [vmem:[%s279 + $0xf0] sm:$0xff]
      %v343 = vld [vmem:[%s279 + $0xf8] sm:$0xff]
      %v344 = vpack.c.bf16 %v313, %v312
      %v345 = vpack.c.bf16 %v315, %v314
      %v346 = vpack.c.bf16 %v317, %v316
      %v347 = vpack.c.bf16 %v319, %v318
      %v348 = vpack.c.bf16 %v321, %v320
      %v349 = vpack.c.bf16 %v323, %v322
      %v350 = vpack.c.bf16 %v325, %v324
      %v351 = vpack.c.bf16 %v327, %v326
      %v352 = vpack.c.bf16 %v329, %v328
      %v353 = vpack.c.bf16 %v331, %v330
      %v354 = vpack.c.bf16 %v333, %v332
      %v355 = vpack.c.bf16 %v335, %v334
      %v356 = vpack.c.bf16 %v337, %v336
      %v357 = vpack.c.bf16 %v339, %v338
      %v358 = vpack.c.bf16 %v341, %v340
      %v359 = vpack.c.bf16 %v343, %v342
      %v360 = vld [vmem:[%s1] sm:$0xf]
      %v361 = vld [vmem:[%s1 + $0x4] sm:$0xf]
      %v362 = vld [vmem:[%s2] sm:$0x1]
      %v364 = vlaneseq
      %v365 = vshrl.u32 %v364, 7
      %v366 = vsub.s32 0, %v365
      %v367 = vrot.slane %v362, %v366
      %v371 = vunpack.c.l.b16 %v360
      %v372 = vunpack.c.l.b16 %v361
      %v373 = vpack.c.b16 %v372, %v371
      %vm375 = vcmask 130048
      %v377 = vsel %vm375, %v344, 0
      %v380 = vsel %vm375, %v345, 0
      %v383 = vsel %vm375, %v346, 0
      %v386 = vsel %vm375, %v347, 0
      %v389 = vsel %vm375, %v348, 0
      %v392 = vsel %vm375, %v349, 0
      %v395 = vsel %vm375, %v350, 0
      %v398 = vsel %vm375, %v351, 0
      %v401 = vsel %vm375, %v352, 0
      %v404 = vsel %vm375, %v353, 0
      %v407 = vsel %vm375, %v354, 0
      %v410 = vsel %vm375, %v355, 0
      %v413 = vsel %vm375, %v356, 0
      %v416 = vsel %vm375, %v357, 0
      %v419 = vsel %vm375, %v358, 0
      %v422 = vsel %vm375, %v359, 0
      %424 = vmatprep.subr.bf16.mxu0 0
      %425 = vmatpush1.bf16.msra.mxu0 %v373
      %426 = vmatprep.subr.bf16.mxu0 0
      %427 = vmatpush1.bf16.msra.mxu0 0
      %428 = vmatprep.subr.bf16.mxu0 0
      %429 = vmatpush1.bf16.msra.mxu0 0
      %430 = vmatprep.subr.bf16.mxu0 0
      %431 = vmatpush1.bf16.msra.mxu0 0
      %432 = vmatprep.subr.bf16.mxu0 0
      %433 = vmatpush1.bf16.msra.mxu0 0
      %434 = vmatprep.subr.bf16.mxu0 0
      %435 = vmatpush1.bf16.msra.mxu0 0
      %436 = vmatprep.subr.bf16.mxu0 0
      %437 = vmatpush1.bf16.msra.mxu0 0
      %438 = vmatprep.subr.bf16.mxu0 0
      %439 = vmatpush1.bf16.msra.mxu0 0
      %440 = vmatprep.subr.bf16.mxu0 0
      %441 = vmatpush1.bf16.msra.mxu0 0
      %442 = vmatprep.subr.bf16.mxu0 0
      %443 = vmatpush1.bf16.msra.mxu0 0
      %444 = vmatprep.subr.bf16.mxu0 0
      %445 = vmatpush1.bf16.msra.mxu0 0
      %446 = vmatprep.subr.bf16.mxu0 0
      %447 = vmatpush1.bf16.msra.mxu0 0
      %448 = vmatprep.subr.bf16.mxu0 0
      %449 = vmatpush1.bf16.msra.mxu0 0
      %450 = vmatprep.subr.bf16.mxu0 0
      %451 = vmatpush1.bf16.msra.mxu0 0
      %452 = vmatprep.subr.bf16.mxu0 0
      %453 = vmatpush1.bf16.msra.mxu0 0
      %454 = vmatprep.subr.bf16.mxu0 0
      %455 = vmatpush1.bf16.msra.mxu0 0
      %456 = vmatprep.mubr.bf16.mxu0 0
      %457 = vmatmul.mubr.bf16.gmra.mrb[0].mxu0 %v377
      %v458 = vpop.f32.mrb[0].mxu0
      %v459 = vadd.f32 %v367, %v458
      %v460 = vpop.f32.mrb[0].mxu0
      %v461 = vpop.f32.mrb[0].mxu0
      %v462 = vadd.f32 %v367, %v461
      %v463 = vpop.f32.mrb[0].mxu0
      %464 = vmatprep.mubr.bf16.mxu0 0
      %465 = vmatmul.mubr.bf16.gmra.mrb[0].mxu0 %v380
      %v466 = vpop.f32.mrb[0].mxu0
      %v467 = vadd.f32 %v367, %v466
      %v468 = vpop.f32.mrb[0].mxu0
      %v469 = vpop.f32.mrb[0].mxu0
      %v470 = vadd.f32 %v367, %v469
      %v471 = vpop.f32.mrb[0].mxu0
      %472 = vmatprep.mubr.bf16.mxu0 0
      %473 = vmatmul.mubr.bf16.gmra.mrb[0].mxu0 %v383
      %v474 = vpop.f32.mrb[0].mxu0
      %v475 = vadd.f32 %v367, %v474
      %v476 = vpop.f32.mrb[0].mxu0
      %v477 = vpop.f32.mrb[0].mxu0
      %v478 = vadd.f32 %v367, %v477
      %v479 = vpop.f32.mrb[0].mxu0
      %480 = vmatprep.mubr.bf16.mxu0 0
      %481 = vmatmul.mubr.bf16.gmra.mrb[0].mxu0 %v386
      %v482 = vpop.f32.mrb[0].mxu0
      %v483 = vadd.f32 %v367, %v482
      %v484 = vpop.f32.mrb[0].mxu0
      %v485 = vpop.f32.mrb[0].mxu0
      %v486 = vadd.f32 %v367, %v485
      %v487 = vpop.f32.mrb[0].mxu0
      %488 = vmatprep.mubr.bf16.mxu0 0
      %489 = vmatmul.mubr.bf16.gmra.mrb[0].mxu0 %v389
      %v490 = vpop.f32.mrb[0].mxu0
      %v491 = vadd.f32 %v367, %v490
      %v492 = vpop.f32.mrb[0].mxu0
      %v493 = vpop.f32.mrb[0].mxu0
      %v494 = vadd.f32 %v367, %v493
      %v495 = vpop.f32.mrb[0].mxu0
      %496 = vmatprep.mubr.bf16.mxu0 0
      %497 = vmatmul.mubr.bf16.gmra.mrb[0].mxu0 %v392
      %v498 = vpop.f32.mrb[0].mxu0
      %v499 = vadd.f32 %v367, %v498
      %v500 = vpop.f32.mrb[0].mxu0
      %v501 = vpop.f32.mrb[0].mxu0
      %v502 = vadd.f32 %v367, %v501
      %v503 = vpop.f32.mrb[0].mxu0
      %504 = vmatprep.mubr.bf16.mxu0 0
      %505 = vmatmul.mubr.bf16.gmra.mrb[0].mxu0 %v395
      %v506 = vpop.f32.mrb[0].mxu0
      %v507 = vadd.f32 %v367, %v506
      %v508 = vpop.f32.mrb[0].mxu0
      %v509 = vpop.f32.mrb[0].mxu0
      %v510 = vadd.f32 %v367, %v509
      %v511 = vpop.f32.mrb[0].mxu0
      %512 = vmatprep.mubr.bf16.mxu0 0
      %513 = vmatmul.mubr.bf16.gmra.mrb[0].mxu0 %v398
      %v514 = vpop.f32.mrb[0].mxu0
      %v515 = vadd.f32 %v367, %v514
      %v516 = vpop.f32.mrb[0].mxu0
      %v517 = vpop.f32.mrb[0].mxu0
      %v518 = vadd.f32 %v367, %v517
      %v519 = vpop.f32.mrb[0].mxu0
      %520 = vmatprep.mubr.bf16.mxu0 0
      %521 = vmatmul.mubr.bf16.gmra.mrb[0].mxu0 %v401
      %v522 = vpop.f32.mrb[0].mxu0
      %v523 = vadd.f32 %v367, %v522
      %v524 = vpop.f32.mrb[0].mxu0
      %v525 = vpop.f32.mrb[0].mxu0
      %v526 = vadd.f32 %v367, %v525
      %v527 = vpop.f32.mrb[0].mxu0
      %528 = vmatprep.mubr.bf16.mxu0 0
      %529 = vmatmul.mubr.bf16.gmra.mrb[0].mxu0 %v404
      %v530 = vpop.f32.mrb[0].mxu0
      %v531 = vadd.f32 %v367, %v530
      %v532 = vpop.f32.mrb[0].mxu0
      %v533 = vpop.f32.mrb[0].mxu0
      %v534 = vadd.f32 %v367, %v533
      %v535 = vpop.f32.mrb[0].mxu0
      %536 = vmatprep.mubr.bf16.mxu0 0
      %537 = vmatmul.mubr.bf16.gmra.mrb[0].mxu0 %v407
      %v538 = vpop.f32.mrb[0].mxu0
      %v539 = vadd.f32 %v367, %v538
      %v540 = vpop.f32.mrb[0].mxu0
      %v541 = vpop.f32.mrb[0].mxu0
      %v542 = vadd.f32 %v367, %v541
      %v543 = vpop.f32.mrb[0].mxu0
      %544 = vmatprep.mubr.bf16.mxu0 0
      %545 = vmatmul.mubr.bf16.gmra.mrb[0].mxu0 %v410
      %v546 = vpop.f32.mrb[0].mxu0
      %v547 = vadd.f32 %v367, %v546
      %v548 = vpop.f32.mrb[0].mxu0
      %v549 = vpop.f32.mrb[0].mxu0
      %v550 = vadd.f32 %v367, %v549
      %v551 = vpop.f32.mrb[0].mxu0
      %552 = vmatprep.mubr.bf16.mxu0 0
      %553 = vmatmul.mubr.bf16.gmra.mrb[0].mxu0 %v413
      %v554 = vpop.f32.mrb[0].mxu0
      %v555 = vadd.f32 %v367, %v554
      %v556 = vpop.f32.mrb[0].mxu0
      %v557 = vpop.f32.mrb[0].mxu0
      %v558 = vadd.f32 %v367, %v557
      %v559 = vpop.f32.mrb[0].mxu0
      %560 = vmatprep.mubr.bf16.mxu0 0
      %561 = vmatmul.mubr.bf16.gmra.mrb[0].mxu0 %v416
      %v562 = vpop.f32.mrb[0].mxu0
      %v563 = vadd.f32 %v367, %v562
      %v564 = vpop.f32.mrb[0].mxu0
      %v565 = vpop.f32.mrb[0].mxu0
      %v566 = vadd.f32 %v367, %v565
      %v567 = vpop.f32.mrb[0].mxu0
      %568 = vmatprep.mubr.bf16.mxu0 0
      %569 = vmatmul.mubr.bf16.gmra.mrb[0].mxu0 %v419
      %v570 = vpop.f32.mrb[0].mxu0
      %v571 = vadd.f32 %v367, %v570
      %v572 = vpop.f32.mrb[0].mxu0
      %v573 = vpop.f32.mrb[0].mxu0
      %v574 = vadd.f32 %v367, %v573
      %v575 = vpop.f32.mrb[0].mxu0
      %576 = vmatprep.mubr.bf16.mxu0 0
      %577 = vmatmul.mubr.bf16.gmra.mrb[0].mxu0 %v422
      %v578 = vpop.f32.mrb[0].mxu0
      %v579 = vadd.f32 %v367, %v578
      %v580 = vpop.f32.mrb[0].mxu0
      %v581 = vpop.f32.mrb[0].mxu0
      %v582 = vadd.f32 %v367, %v581
      %v583 = vpop.f32.mrb[0].mxu0
      %584 = vdwg.mxu0
      %vm585 = vcmask 15360
      %586 = vst.msk [vmem:[%s289] sm:$0xff] %vm585, %v459
      %587 = vst.msk [vmem:[%s289 + $0x8] sm:$0xff] %vm585, %v462
      %588 = vst.msk [vmem:[%s289 + $0x10] sm:$0xff] %vm585, %v467
      %589 = vst.msk [vmem:[%s289 + $0x18] sm:$0xff] %vm585, %v470
      %590 = vst.msk [vmem:[%s289 + $0x20] sm:$0xff] %vm585, %v475
      %591 = vst.msk [vmem:[%s289 + $0x28] sm:$0xff] %vm585, %v478
      %592 = vst.msk [vmem:[%s289 + $0x30] sm:$0xff] %vm585, %v483
      %593 = vst.msk [vmem:[%s289 + $0x38] sm:$0xff] %vm585, %v486
      %594 = vst.msk [vmem:[%s289 + $0x40] sm:$0xff] %vm585, %v491
      %595 = vst.msk [vmem:[%s289 + $0x48] sm:$0xff] %vm585, %v494
      %596 = vst.msk [vmem:[%s289 + $0x50] sm:$0xff] %vm585, %v499
      %597 = vst.msk [vmem:[%s289 + $0x58] sm:$0xff] %vm585, %v502
      %598 = vst.msk [vmem:[%s289 + $0x60] sm:$0xff] %vm585, %v507
      %599 = vst.msk [vmem:[%s289 + $0x68] sm:$0xff] %vm585, %v510
      %600 = vst.msk [vmem:[%s289 + $0x70] sm:$0xff] %vm585, %v515
      %601 = vst.msk [vmem:[%s289 + $0x78] sm:$0xff] %vm585, %v518
      %602 = vst.msk [vmem:[%s289 + $0x80] sm:$0xff] %vm585, %v523
      %603 = vst.msk [vmem:[%s289 + $0x88] sm:$0xff] %vm585, %v526
      %604 = vst.msk [vmem:[%s289 + $0x90] sm:$0xff] %vm585, %v531
      %605 = vst.msk [vmem:[%s289 + $0x98] sm:$0xff] %vm585, %v534
      %606 = vst.msk [vmem:[%s289 + $0xa0] sm:$0xff] %vm585, %v539
      %607 = vst.msk [vmem:[%s289 + $0xa8] sm:$0xff] %vm585, %v542
      %608 = vst.msk [vmem:[%s289 + $0xb0] sm:$0xff] %vm585, %v547
      %609 = vst.msk [vmem:[%s289 + $0xb8] sm:$0xff] %vm585, %v550
      %610 = vst.msk [vmem:[%s289 + $0xc0] sm:$0xff] %vm585, %v555
      %611 = vst.msk [vmem:[%s289 + $0xc8] sm:$0xff] %vm585, %v558
      %612 = vst.msk [vmem:[%s289 + $0xd0] sm:$0xff] %vm585, %v563
      %613 = vst.msk [vmem:[%s289 + $0xd8] sm:$0xff] %vm585, %v566
      %614 = vst.msk [vmem:[%s289 + $0xe0] sm:$0xff] %vm585, %v571
      %615 = vst.msk [vmem:[%s289 + $0xe8] sm:$0xff] %vm585, %v574
      %616 = vst.msk [vmem:[%s289 + $0xf0] sm:$0xff] %vm585, %v579
      %617 = vst.msk [vmem:[%s289 + $0xf8] sm:$0xff] %vm585, %v582
      %650 = vrot.lane.b32.xlu0 %v459, 126
      %v651 = vpop.permute.xlu0 %650
      %652 = vrot.lane.b32.xlu0 %v462, 126
      %v653 = vpop.permute.xlu0 %652
      %654 = vrot.lane.b32.xlu0 %v467, 126
      %v655 = vpop.permute.xlu0 %654
      %656 = vrot.lane.b32.xlu0 %v470, 126
      %v657 = vpop.permute.xlu0 %656
      %658 = vrot.lane.b32.xlu0 %v475, 126
      %v659 = vpop.permute.xlu0 %658
      %660 = vrot.lane.b32.xlu0 %v478, 126
      %v661 = vpop.permute.xlu0 %660
      %662 = vrot.lane.b32.xlu0 %v483, 126
      %v663 = vpop.permute.xlu0 %662
      %664 = vrot.lane.b32.xlu0 %v486, 126
      %v665 = vpop.permute.xlu0 %664
      %666 = vrot.lane.b32.xlu0 %v491, 126
      %v667 = vpop.permute.xlu0 %666
      %668 = vrot.lane.b32.xlu0 %v494, 126
      %v669 = vpop.permute.xlu0 %668
      %670 = vrot.lane.b32.xlu0 %v499, 126
      %v671 = vpop.permute.xlu0 %670
      %672 = vrot.lane.b32.xlu0 %v502, 126
      %v673 = vpop.permute.xlu0 %672
      %674 = vrot.lane.b32.xlu0 %v507, 126
      %v675 = vpop.permute.xlu0 %674
      %676 = vrot.lane.b32.xlu0 %v510, 126
      %v677 = vpop.permute.xlu0 %676
      %678 = vrot.lane.b32.xlu0 %v515, 126
      %v679 = vpop.permute.xlu0 %678
      %680 = vrot.lane.b32.xlu0 %v518, 126
      %v681 = vpop.permute.xlu0 %680
      %682 = vrot.lane.b32.xlu0 %v523, 126
      %v683 = vpop.permute.xlu0 %682
      %684 = vrot.lane.b32.xlu0 %v526, 126
      %v685 = vpop.permute.xlu0 %684
      %686 = vrot.lane.b32.xlu0 %v531, 126
      %v687 = vpop.permute.xlu0 %686
      %688 = vrot.lane.b32.xlu0 %v534, 126
      %v689 = vpop.permute.xlu0 %688
      %690 = vrot.lane.b32.xlu0 %v539, 126
      %v691 = vpop.permute.xlu0 %690
      %692 = vrot.lane.b32.xlu0 %v542, 126
      %v693 = vpop.permute.xlu0 %692
      %694 = vrot.lane.b32.xlu0 %v547, 126
      %v695 = vpop.permute.xlu0 %694
      %696 = vrot.lane.b32.xlu0 %v550, 126
      %v697 = vpop.permute.xlu0 %696
      %698 = vrot.lane.b32.xlu0 %v555, 126
      %v699 = vpop.permute.xlu0 %698
      %700 = vrot.lane.b32.xlu0 %v558, 126
      %v701 = vpop.permute.xlu0 %700
      %702 = vrot.lane.b32.xlu0 %v563, 126
      %v703 = vpop.permute.xlu0 %702
      %704 = vrot.lane.b32.xlu0 %v566, 126
      %v705 = vpop.permute.xlu0 %704
      %706 = vrot.lane.b32.xlu0 %v571, 126
      %v707 = vpop.permute.xlu0 %706
      %708 = vrot.lane.b32.xlu0 %v574, 126
      %v709 = vpop.permute.xlu0 %708
      %710 = vrot.lane.b32.xlu0 %v579, 126
      %v711 = vpop.permute.xlu0 %710
      %712 = vrot.lane.b32.xlu0 %v582, 126
      %v713 = vpop.permute.xlu0 %712
      %746 = vst.msk [vmem:[%s299] sm:$0xff] %vm585, %v651
      %747 = vst.msk [vmem:[%s299 + $0x8] sm:$0xff] %vm585, %v653
      %748 = vst.msk [vmem:[%s299 + $0x10] sm:$0xff] %vm585, %v655
      %749 = vst.msk [vmem:[%s299 + $0x18] sm:$0xff] %vm585, %v657
      %750 = vst.msk [vmem:[%s299 + $0x20] sm:$0xff] %vm585, %v659
      %751 = vst.msk [vmem:[%s299 + $0x28] sm:$0xff] %vm585, %v661
      %752 = vst.msk [vmem:[%s299 + $0x30] sm:$0xff] %vm585, %v663
      %753 = vst.msk [vmem:[%s299 + $0x38] sm:$0xff] %vm585, %v665
      %754 = vst.msk [vmem:[%s299 + $0x40] sm:$0xff] %vm585, %v667
      %755 = vst.msk [vmem:[%s299 + $0x48] sm:$0xff] %vm585, %v669
      %756 = vst.msk [vmem:[%s299 + $0x50] sm:$0xff] %vm585, %v671
      %757 = vst.msk [vmem:[%s299 + $0x58] sm:$0xff] %vm585, %v673
      %758 = vst.msk [vmem:[%s299 + $0x60] sm:$0xff] %vm585, %v675
      %759 = vst.msk [vmem:[%s299 + $0x68] sm:$0xff] %vm585, %v677
      %760 = vst.msk [vmem:[%s299 + $0x70] sm:$0xff] %vm585, %v679
      %761 = vst.msk [vmem:[%s299 + $0x78] sm:$0xff] %vm585, %v681
      %762 = vst.msk [vmem:[%s299 + $0x80] sm:$0xff] %vm585, %v683
      %763 = vst.msk [vmem:[%s299 + $0x88] sm:$0xff] %vm585, %v685
      %764 = vst.msk [vmem:[%s299 + $0x90] sm:$0xff] %vm585, %v687
      %765 = vst.msk [vmem:[%s299 + $0x98] sm:$0xff] %vm585, %v689
      %766 = vst.msk [vmem:[%s299 + $0xa0] sm:$0xff] %vm585, %v691
      %767 = vst.msk [vmem:[%s299 + $0xa8] sm:$0xff] %vm585, %v693
      %768 = vst.msk [vmem:[%s299 + $0xb0] sm:$0xff] %vm585, %v695
      %769 = vst.msk [vmem:[%s299 + $0xb8] sm:$0xff] %vm585, %v697
      %770 = vst.msk [vmem:[%s299 + $0xc0] sm:$0xff] %vm585, %v699
      %771 = vst.msk [vmem:[%s299 + $0xc8] sm:$0xff] %vm585, %v701
      %772 = vst.msk [vmem:[%s299 + $0xd0] sm:$0xff] %vm585, %v703
      %773 = vst.msk [vmem:[%s299 + $0xd8] sm:$0xff] %vm585, %v705
      %774 = vst.msk [vmem:[%s299 + $0xe0] sm:$0xff] %vm585, %v707
      %775 = vst.msk [vmem:[%s299 + $0xe8] sm:$0xff] %vm585, %v709
      %776 = vst.msk [vmem:[%s299 + $0xf0] sm:$0xff] %vm585, %v711
      %777 = vst.msk [vmem:[%s299 + $0xf8] sm:$0xff] %vm585, %v713
      %v778 = vpack.c.bf16 %v462, %v459
      %v779 = vpack.c.bf16 %v470, %v467
      %v780 = vpack.c.bf16 %v478, %v475
      %v781 = vpack.c.bf16 %v486, %v483
      %v782 = vpack.c.bf16 %v494, %v491
      %v783 = vpack.c.bf16 %v502, %v499
      %v784 = vpack.c.bf16 %v510, %v507
      %v785 = vpack.c.bf16 %v518, %v515
      %v786 = vpack.c.bf16 %v526, %v523
      %v787 = vpack.c.bf16 %v534, %v531
      %v788 = vpack.c.bf16 %v542, %v539
      %v789 = vpack.c.bf16 %v550, %v547
      %v790 = vpack.c.bf16 %v558, %v555
      %v791 = vpack.c.bf16 %v566, %v563
      %v792 = vpack.c.bf16 %v574, %v571
      %v793 = vpack.c.bf16 %v582, %v579
      %v810 = vunpack.c.l.b16 %v778
      %v811 = vunpack.c.h.b16 %v778
      %v812 = vunpack.c.l.b16 %v779
      %v813 = vunpack.c.h.b16 %v779
      %v814 = vunpack.c.l.b16 %v780
      %v815 = vunpack.c.h.b16 %v780
      %v816 = vunpack.c.l.b16 %v781
      %v817 = vunpack.c.h.b16 %v781
      %v818 = vunpack.c.l.b16 %v782
      %v819 = vunpack.c.h.b16 %v782
      %v820 = vunpack.c.l.b16 %v783
      %v821 = vunpack.c.h.b16 %v783
      %v822 = vunpack.c.l.b16 %v784
      %v823 = vunpack.c.h.b16 %v784
      %v824 = vunpack.c.l.b16 %v785
      %v825 = vunpack.c.h.b16 %v785
      %v826 = vunpack.c.l.b16 %v786
      %v827 = vunpack.c.h.b16 %v786
      %v828 = vunpack.c.l.b16 %v787
      %v829 = vunpack.c.h.b16 %v787
      %v830 = vunpack.c.l.b16 %v788
      %v831 = vunpack.c.h.b16 %v788
      %v832 = vunpack.c.l.b16 %v789
      %v833 = vunpack.c.h.b16 %v789
      %v834 = vunpack.c.l.b16 %v790
      %v835 = vunpack.c.h.b16 %v790
      %v836 = vunpack.c.l.b16 %v791
      %v837 = vunpack.c.h.b16 %v791
      %v838 = vunpack.c.l.b16 %v792
      %v839 = vunpack.c.h.b16 %v792
      %v840 = vunpack.c.l.b16 %v793
      %v841 = vunpack.c.h.b16 %v793
      %v842 = vpack.c.b16 %v810, %v810
      %v843 = vpack.c.b16 %v811, %v811
      %v844 = vpack.c.b16 %v812, %v812
      %v845 = vpack.c.b16 %v813, %v813
      %v846 = vpack.c.b16 %v814, %v814
      %v847 = vpack.c.b16 %v815, %v815
      %v848 = vpack.c.b16 %v816, %v816
      %v849 = vpack.c.b16 %v817, %v817
      %v850 = vpack.c.b16 %v818, %v818
      %v851 = vpack.c.b16 %v819, %v819
      %v852 = vpack.c.b16 %v820, %v820
      %v853 = vpack.c.b16 %v821, %v821
      %v854 = vpack.c.b16 %v822, %v822
      %v855 = vpack.c.b16 %v823, %v823
      %v856 = vpack.c.b16 %v824, %v824
      %v857 = vpack.c.b16 %v825, %v825
      %v858 = vpack.c.b16 %v826, %v826
      %v859 = vpack.c.b16 %v827, %v827
      %v860 = vpack.c.b16 %v828, %v828
      %v861 = vpack.c.b16 %v829, %v829
      %v862 = vpack.c.b16 %v830, %v830
      %v863 = vpack.c.b16 %v831, %v831
      %v864 = vpack.c.b16 %v832, %v832
      %v865 = vpack.c.b16 %v833, %v833
      %v866 = vpack.c.b16 %v834, %v834
      %v867 = vpack.c.b16 %v835, %v835
      %v868 = vpack.c.b16 %v836, %v836
      %v869 = vpack.c.b16 %v837, %v837
      %v870 = vpack.c.b16 %v838, %v838
      %v871 = vpack.c.b16 %v839, %v839
      %v872 = vpack.c.b16 %v840, %v840
      %v873 = vpack.c.b16 %v841, %v841
      %874 = vrot.lane.b32.xlu0 %v842, 124
      %v875 = vpop.permute.xlu0 %874
      %876 = vrot.lane.b32.xlu0 %v843, 124
      %v877 = vpop.permute.xlu0 %876
      %878 = vrot.lane.b32.xlu0 %v844, 124
      %v879 = vpop.permute.xlu0 %878
      %880 = vrot.lane.b32.xlu0 %v845, 124
      %v881 = vpop.permute.xlu0 %880
      %882 = vrot.lane.b32.xlu0 %v846, 124
      %v883 = vpop.permute.xlu0 %882
      %884 = vrot.lane.b32.xlu0 %v847, 124
      %v885 = vpop.permute.xlu0 %884
      %886 = vrot.lane.b32.xlu0 %v848, 124
      %v887 = vpop.permute.xlu0 %886
      %888 = vrot.lane.b32.xlu0 %v849, 124
      %v889 = vpop.permute.xlu0 %888
      %890 = vrot.lane.b32.xlu0 %v850, 124
      %v891 = vpop.permute.xlu0 %890
      %892 = vrot.lane.b32.xlu0 %v851, 124
      %v893 = vpop.permute.xlu0 %892
      %894 = vrot.lane.b32.xlu0 %v852, 124
      %v895 = vpop.permute.xlu0 %894
      %896 = vrot.lane.b32.xlu0 %v853, 124
      %v897 = vpop.permute.xlu0 %896
      %898 = vrot.lane.b32.xlu0 %v854, 124
      %v899 = vpop.permute.xlu0 %898
      %900 = vrot.lane.b32.xlu0 %v855, 124
      %v901 = vpop.permute.xlu0 %900
      %902 = vrot.lane.b32.xlu0 %v856, 124
      %v903 = vpop.permute.xlu0 %902
      %904 = vrot.lane.b32.xlu0 %v857, 124
      %v905 = vpop.permute.xlu0 %904
      %906 = vrot.lane.b32.xlu0 %v858, 124
      %v907 = vpop.permute.xlu0 %906
      %908 = vrot.lane.b32.xlu0 %v859, 124
      %v909 = vpop.permute.xlu0 %908
      %910 = vrot.lane.b32.xlu0 %v860, 124
      %v911 = vpop.permute.xlu0 %910
      %912 = vrot.lane.b32.xlu0 %v861, 124
      %v913 = vpop.permute.xlu0 %912
      %914 = vrot.lane.b32.xlu0 %v862, 124
      %v915 = vpop.permute.xlu0 %914
      %916 = vrot.lane.b32.xlu0 %v863, 124
      %v917 = vpop.permute.xlu0 %916
      %918 = vrot.lane.b32.xlu0 %v864, 124
      %v919 = vpop.permute.xlu0 %918
      %920 = vrot.lane.b32.xlu0 %v865, 124
      %v921 = vpop.permute.xlu0 %920
      %922 = vrot.lane.b32.xlu0 %v866, 124
      %v923 = vpop.permute.xlu0 %922
      %924 = vrot.lane.b32.xlu0 %v867, 124
      %v925 = vpop.permute.xlu0 %924
      %926 = vrot.lane.b32.xlu0 %v868, 124
      %v927 = vpop.permute.xlu0 %926
      %928 = vrot.lane.b32.xlu0 %v869, 124
      %v929 = vpop.permute.xlu0 %928
      %930 = vrot.lane.b32.xlu0 %v870, 124
      %v931 = vpop.permute.xlu0 %930
      %932 = vrot.lane.b32.xlu0 %v871, 124
      %v933 = vpop.permute.xlu0 %932
      %934 = vrot.lane.b32.xlu0 %v872, 124
      %v935 = vpop.permute.xlu0 %934
      %936 = vrot.lane.b32.xlu0 %v873, 124
      %v937 = vpop.permute.xlu0 %936
      %vm970 = vcmask 125952
      %971 = vst.msk [vmem:[%s309] sm:$0xf] %vm970, %v875
      %972 = vst.msk [vmem:[%s309 + $0x4] sm:$0xf] %vm970, %v877
      %973 = vst.msk [vmem:[%s309 + $0x8] sm:$0xf] %vm970, %v879
      %974 = vst.msk [vmem:[%s309 + $0xc] sm:$0xf] %vm970, %v881
      %975 = vst.msk [vmem:[%s309 + $0x10] sm:$0xf] %vm970, %v883
      %976 = vst.msk [vmem:[%s309 + $0x14] sm:$0xf] %vm970, %v885
      %977 = vst.msk [vmem:[%s309 + $0x18] sm:$0xf] %vm970, %v887
      %978 = vst.msk [vmem:[%s309 + $0x1c] sm:$0xf] %vm970, %v889
      %979 = vst.msk [vmem:[%s309 + $0x20] sm:$0xf] %vm970, %v891
      %980 = vst.msk [vmem:[%s309 + $0x24] sm:$0xf] %vm970, %v893
      %981 = vst.msk [vmem:[%s309 + $0x28] sm:$0xf] %vm970, %v895
      %982 = vst.msk [vmem:[%s309 + $0x2c] sm:$0xf] %vm970, %v897
      %983 = vst.msk [vmem:[%s309 + $0x30] sm:$0xf] %vm970, %v899
      %984 = vst.msk [vmem:[%s309 + $0x34] sm:$0xf] %vm970, %v901
      %985 = vst.msk [vmem:[%s309 + $0x38] sm:$0xf] %vm970, %v903
      %986 = vst.msk [vmem:[%s309 + $0x3c] sm:$0xf] %vm970, %v905
      %987 = vst.msk [vmem:[%s309 + $0x40] sm:$0xf] %vm970, %v907
      %988 = vst.msk [vmem:[%s309 + $0x44] sm:$0xf] %vm970, %v909
      %989 = vst.msk [vmem:[%s309 + $0x48] sm:$0xf] %vm970, %v911
      %990 = vst.msk [vmem:[%s309 + $0x4c] sm:$0xf] %vm970, %v913
      %991 = vst.msk [vmem:[%s309 + $0x50] sm:$0xf] %vm970, %v915
      %992 = vst.msk [vmem:[%s309 + $0x54] sm:$0xf] %vm970, %v917
      %993 = vst.msk [vmem:[%s309 + $0x58] sm:$0xf] %vm970, %v919
      %994 = vst.msk [vmem:[%s309 + $0x5c] sm:$0xf] %vm970, %v921
      %995 = vst.msk [vmem:[%s309 + $0x60] sm:$0xf] %vm970, %v923
      %996 = vst.msk [vmem:[%s309 + $0x64] sm:$0xf] %vm970, %v925
      %997 = vst.msk [vmem:[%s309 + $0x68] sm:$0xf] %vm970, %v927
      %998 = vst.msk [vmem:[%s309 + $0x6c] sm:$0xf] %vm970, %v929
      %999 = vst.msk [vmem:[%s309 + $0x70] sm:$0xf] %vm970, %v931
      %1000 = vst.msk [vmem:[%s309 + $0x74] sm:$0xf] %vm970, %v933
      %1001 = vst.msk [vmem:[%s309 + $0x78] sm:$0xf] %vm970, %v935
      %1002 = vst.msk [vmem:[%s309 + $0x7c] sm:$0xf] %vm970, %v937
      %s1003 = smul.u32 32, %s22
      %p1004 = scmp.lt.s32.totalorder %s21, 1
      %s1005 = scalar_select %p1004, %s21, 1
      %p1006 = scmp.lt.s32.totalorder %s1003, 31
      %s1007 = scalar_select %p1006, %s1003, 31
      %s1008 = smul.addr %s1005, 32
      %s1009 = sadd.s32 %s1007, %s1008
      %s1010 = smul.addr %s1009, 8
      %s1011 = scalar_lea.vmem %s3, %s1010
      %s1012 = smul.u32 32, %s22
      %p1013 = scmp.lt.s32.totalorder %s21, 1
      %s1014 = scalar_select %p1013, %s21, 1
      %p1015 = scmp.lt.s32.totalorder %s1012, 31
      %s1016 = scalar_select %p1015, %s1012, 31
      %s1017 = smul.addr %s1014, 32
      %s1018 = sadd.s32 %s1016, %s1017
      %s1019 = smul.addr %s1018, 8
      %s1020 = scalar_lea.vmem %s4, %s1019
      %s1021 = smul.u32 32, %s22
      %p1022 = scmp.lt.s32.totalorder %s21, 1
      %s1023 = scalar_select %p1022, %s21, 1
      %p1024 = scmp.lt.s32.totalorder %s1021, 31
      %s1025 = scalar_select %p1024, %s1021, 31
      %s1026 = smul.addr %s1023, 32
      %s1027 = sadd.s32 %s1025, %s1026
      %s1028 = smul.addr %s1027, 4
      %s1029 = scalar_lea.vmem %s5, %s1028
      // Predicated region
      $region33: #{tpu_custom_call.1} parent=31 // pred_check
        %p1030 = pneg %p119
      $region34: #{tpu_custom_call.1} parent=31 // pred_check_branch
        %1032 = sbr.rel (%p1030) target = $region36
      $region35: #{tpu_custom_call.1} parent=31 // pred_region
        %s1033 = smul.u32 32, %s22
      $region36: #{tpu_custom_call.1} parent=31 // pred_fallthru
        _
      // Predicated region
      $region37: #{tpu_custom_call.1} parent=31 // pred_check
        %p1034 = pneg %p147
      $region38: #{tpu_custom_call.1} parent=31 // pred_check_branch
        %1036 = sbr.rel (%p1034) target = $region40
      $region39: #{tpu_custom_call.1} parent=31 // pred_region
        %s1037 = smul.u32 32, %s22
      $region40: #{tpu_custom_call.1} parent=31 // pred_fallthru
        _
      // Predicated region
      $region41: #{tpu_custom_call.1} parent=31 // pred_check
        %p1038 = pneg %p175
      $region42: #{tpu_custom_call.1} parent=31 // pred_check_branch
        %1040 = sbr.rel (%p1038) target = $region44
      $region43: #{tpu_custom_call.1} parent=31 // pred_region
        %s1041 = smul.u32 32, %s22
      $region44: #{tpu_custom_call.1} parent=31 // pred_fallthru
        _
    $region32: #{tpu_custom_call.1} parent=5 // pred_fallthru
      _
    %p1042 = scmp.le.s32.totalorder 2, %s12
    // Predicated region
    $region45: #{tpu_custom_call.1} parent=5 // pred_check
      %p1043 = pneg %p1042
    $region46: #{tpu_custom_call.1} parent=5 // pred_check_branch
      %1045 = sbr.rel (%p1043) target = $region48
    $region47: #{tpu_custom_call.1} parent=5 // pred_region
      %s1046 = ssub.s32 %s12, 2
      // Predicated region
      $region49: #{tpu_custom_call.1} parent=47 // pred_check
        %p1047 = pneg %p125
      $region50: #{tpu_custom_call.1} parent=47 // pred_check_branch
        %1049 = sbr.rel (%p1047) target = $region52
      $region51: #{tpu_custom_call.1} parent=47 // pred_region
        %s1050 = smul.u32 32, %s24
        %p1051 = scmp.lt.s32.totalorder %s23, 1
        %s1052 = scalar_select %p1051, %s23, 1
        %p1053 = scmp.lt.s32.totalorder %s1050, 31
        %s1054 = scalar_select %p1053, %s1050, 31
        %s1055 = smul.addr %s1052, 32
        %s1056 = sadd.s32 %s1054, %s1055
        %s1057 = smul.addr %s1056, 8
        %s1058 = scalar_lea.vmem %s3, %s1057
      $region52: #{tpu_custom_call.1} parent=47 // pred_fallthru
        _
      // Predicated region
      $region53: #{tpu_custom_call.1} parent=47 // pred_check
        %p1059 = pneg %p153
      $region54: #{tpu_custom_call.1} parent=47 // pred_check_branch
        %1061 = sbr.rel (%p1059) target = $region56
      $region55: #{tpu_custom_call.1} parent=47 // pred_region
        %s1062 = smul.u32 32, %s24
        %p1063 = scmp.lt.s32.totalorder %s23, 1
        %s1064 = scalar_select %p1063, %s23, 1
        %p1065 = scmp.lt.s32.totalorder %s1062, 31
        %s1066 = scalar_select %p1065, %s1062, 31
        %s1067 = smul.addr %s1064, 32
        %s1068 = sadd.s32 %s1066, %s1067
        %s1069 = smul.addr %s1068, 8
        %s1070 = scalar_lea.vmem %s4, %s1069
      $region56: #{tpu_custom_call.1} parent=47 // pred_fallthru
        _
      // Predicated region
      $region57: #{tpu_custom_call.1} parent=47 // pred_check
        %p1071 = pneg %p181
      $region58: #{tpu_custom_call.1} parent=47 // pred_check_branch
        %1073 = sbr.rel (%p1071) target = $region60
      $region59: #{tpu_custom_call.1} parent=47 // pred_region
        %s1074 = smul.u32 32, %s24
        %p1075 = scmp.lt.s32.totalorder %s23, 1
        %s1076 = scalar_select %p1075, %s23, 1
        %p1077 = scmp.lt.s32.totalorder %s1074, 31
        %s1078 = scalar_select %p1077, %s1074, 31
        %s1079 = smul.addr %s1076, 32
        %s1080 = sadd.s32 %s1078, %s1079
        %s1081 = smul.addr %s1080, 4
        %s1082 = scalar_lea.vmem %s5, %s1081
      $region60: #{tpu_custom_call.1} parent=47 // pred_fallthru
        _
    $region48: #{tpu_custom_call.1} parent=5 // pred_fallthru
      _
  $region6: #{tpu_custom_call.1} parent=0 // loop_footer
    %s16 = sadd.s32 1, %s12
  $region7: #{tpu_custom_call.1} parent=0 // loop_footer_branch
    %11 = sbr.rel target = $region3
  $region8: #{tpu_custom_call.1} parent=0 // loop_exit
    _

</llo_original>
